<compile_context>
chip_gen: v7x
topology: tpu7x:2x2x1
jax: 0.10.0
libtpu: 0.0.40
codegen_flags: <defaults>
</compile_context>

<pallas_src>
import jax
import jax.numpy as jnp
from jax import lax
from jax.experimental import pallas as pl
from jax.experimental.pallas import tpu as pltpu

IN_UNITS = 128   # Postnet default in_units
HIDDEN = 256     # layers_size[0]
EPS = 1e-5       # BatchNorm1d default eps
TM_MAX = 2048    # row tile; sweep 1024-4096 (lower cap on v7x, higher on v6e)


def postnet_kernel(x_ref, w1t_ref, b1_ref, w2_ref, b2_ref, out_ref):
    # x_ref:   (TM, IN)      f32   row tile of the flattened (B*T, in_units) input
    # w1t_ref: (HIDDEN, IN)  bf16  BN-folded linear1 weight, transposed
    # b1_ref:  (HIDDEN, 1)   f32   BN-folded linear1 bias (column)
    # w2_ref:  (HIDDEN, 1)   f32   linear2 weight (column)
    # b2_ref:  (1, 1)        f32   linear2 bias (SMEM scalar)
    # out_ref: (1, TM)       f32   lane-dense output row
    x_bf16 = x_ref[...].astype(jnp.bfloat16)
    # h^T[h, m] = sum_k W1f[k, h] * x[m, k]  — contract last dims of both operands
    # (same pattern as q @ k^T in flash attention), bf16 operands, f32 accumulation.
    h_t = lax.dot_general(
        w1t_ref[...], x_bf16,
        dimension_numbers=(((1,), (1,)), ((), ())),
        preferred_element_type=jnp.float32)                 # (HIDDEN, TM)
    h_t = jnp.maximum(h_t + b1_ref[...], 0.0)               # folded BN bias + ReLU
    # Linear(256 -> 1) as VPU multiply + sublane reduction: avoids an N=1 MXU matmul
    # and yields the lane-dense (1, TM) row directly.
    y = jnp.sum(h_t * w2_ref[...], axis=0, keepdims=True) + b2_ref[0, 0]
    out_ref[...] = y


def postnet_forward(x, params, tm_max=TM_MAX):
    """x: (B, T, in_units) float32. Returns (B, T) float32."""
    (w1, b1, gamma, beta, run_mean, run_var, w2, b2) = params
    B, T, IN = x.shape
    H1 = w1.shape[1]

    # ---- fold eval-mode BatchNorm1d into the first linear layer -----------------
    scale = gamma * lax.rsqrt(run_var + EPS)                 # (H1,)
    w1t = (w1 * scale[None, :]).T.astype(jnp.bfloat16)       # (H1, IN), bf16 for MXU rate
    b1f = ((b1 - run_mean) * scale + beta).reshape(H1, 1)    # (H1, 1) column
    w2c = w2.reshape(H1, 1)                                  # (H1, 1) column
    b2s = b2.reshape(1, 1)                                   # SMEM scalar
    # TODO(synk): training-mode BatchNorm (batch statistics) and stochastic Dropout are
    # not implemented; this kernel reproduces the module's inference forward.

    # ---- flatten (B, T) and tile over rows; avoid any jnp.pad of x ---------------
    M = B * T
    x_flat = x.reshape(M, IN)
    if M <= tm_max:
        TM = M                          # single full-dim tile, no padding at all
    else:
        TM = tm_max                     # multiple of 128; last tile may be ragged
    grid_m = pl.cdiv(M, TM)
    M_pad = grid_m * TM                 # output padded columns (if any) are sliced off

    out = pl.pallas_call(
        postnet_kernel,
        out_shape=jax.ShapeDtypeStruct((1, M_pad), jnp.float32),
        grid_spec=pltpu.PrefetchScalarGridSpec(
            num_scalar_prefetch=0,
            grid=(grid_m,),
            in_specs=[
                pl.BlockSpec((TM, IN), lambda i: (i, 0)),        # x row tile
                pl.BlockSpec((H1, IN), lambda i: (0, 0)),        # fused W1^T (invariant)
                pl.BlockSpec((H1, 1), lambda i: (0, 0)),         # fused b1   (invariant)
                pl.BlockSpec((H1, 1), lambda i: (0, 0)),         # W2         (invariant)
                pl.BlockSpec(memory_space=pltpu.MemorySpace.SMEM),  # b2 scalar
            ],
            out_specs=pl.BlockSpec((1, TM), lambda i: (0, i)),   # lane-dense output row
        ),
        compiler_params=pltpu.CompilerParams(
            dimension_semantics=("parallel",)),
    )(x_flat, w1t, b1f, w2c, b2s)

    return out[0, :M].reshape(B, T)


def reference_forward(x, params):
    """Plain-JAX f32 reference mirroring the PyTorch forward (eval mode)."""
    (w1, b1, gamma, beta, run_mean, run_var, w2, b2) = params
    h = x @ w1 + b1                                          # (B, T, H1)
    h = (h - run_mean) * lax.rsqrt(run_var + EPS) * gamma + beta
    h = jax.nn.relu(h)                                       # dropout = identity (eval)
    y = h @ w2 + b2                                          # (B, T, 1)
    return jnp.squeeze(y, axis=-1)                           # (B, T)


def reference_forward_bf16(x, params):
    """Reference with the kernel's exact numerics (BN folded, bf16 matmul operands)."""
    (w1, b1, gamma, beta, run_mean, run_var, w2, b2) = params
    scale = gamma * lax.rsqrt(run_var + EPS)
    w1f = (w1 * scale[None, :]).astype(jnp.bfloat16)
    b1f = (b1 - run_mean) * scale + beta
    h = jnp.dot(x.astype(jnp.bfloat16), w1f,
                preferred_element_type=jnp.float32) + b1f
    h = jax.nn.relu(h)
    y = h @ w2 + b2
    return jnp.squeeze(y, axis=-1)


def init_params(key, in_units=IN_UNITS, hidden=HIDDEN):
    # torch.nn.Linear-style uniform(-1/sqrt(fan_in), 1/sqrt(fan_in)) init,
    # plus non-trivial BatchNorm statistics to exercise the folding.
    ks = jax.random.split(key, 8)
    b1_bound = 1.0 / (in_units ** 0.5)
    b2_bound = 1.0 / (hidden ** 0.5)
    w1 = jax.random.uniform(ks[0], (in_units, hidden), jnp.float32, -b1_bound, b1_bound)
    b1 = jax.random.uniform(ks[1], (hidden,), jnp.float32, -b1_bound, b1_bound)
    gamma = jax.random.uniform(ks[2], (hidden,), jnp.float32, 0.5, 1.5)
    beta = 0.1 * jax.random.normal(ks[3], (hidden,), jnp.float32)
    run_mean = 0.1 * jax.random.normal(ks[4], (hidden,), jnp.float32)
    run_var = jax.random.uniform(ks[5], (hidden,), jnp.float32, 0.5, 1.5)
    w2 = jax.random.uniform(ks[6], (hidden, 1), jnp.float32, -b2_bound, b2_bound)
    b2 = jax.random.uniform(ks[7], (1,), jnp.float32, -b2_bound, b2_bound)
    return (w1, b1, gamma, beta, run_mean, run_var, w2, b2)


if __name__ == "__main__":
    key = jax.random.PRNGKey(0)
    kx, kp = jax.random.split(key)

    B, T = 2, 16
    x = jax.random.normal(kx, (B, T, IN_UNITS), jnp.float32)
    params = init_params(kp)

    out = jax.block_until_ready(postnet_forward(x, params))
    assert out.shape == (B, T), out.shape

    # Tight check against a reference with identical (bf16-operand) numerics.
    ref_matched = reference_forward_bf16(x, params)
    err_matched = float(jnp.max(jnp.abs(out - ref_matched)))
    assert jnp.allclose(out, ref_matched, rtol=1e-4, atol=1e-4), err_matched

    # Looser check against the pure-f32 PyTorch-equivalent forward
    # (slack only for bf16 operand rounding in the first matmul).
    ref_f32 = reference_forward(x, params)
    err_f32 = float(jnp.max(jnp.abs(out - ref_f32)))
    assert jnp.allclose(out, ref_f32, rtol=3e-2, atol=3e-2), err_f32

    print("KERNEL_OK")
</pallas_src>

<mosaic_0001>
module attributes {stable_mosaic.version = 11 : i64} {
  func.func @postnet_kernel(%arg0: i32, %arg1: memref<32x128xf32, #tpu.memory_space<vmem>>, %arg2: memref<256x128xbf16, #tpu.memory_space<vmem>>, %arg3: memref<256x1xf32, #tpu.memory_space<vmem>>, %arg4: memref<256x1xf32, #tpu.memory_space<vmem>>, %arg5: memref<1x1xf32, #tpu.memory_space<smem>>, %arg6: memref<1x32xf32, #tpu.memory_space<vmem>>) attributes {dimension_semantics = [#tpu.dimension_semantics<parallel>], iteration_bounds = array<i64: 1>, scalar_prefetch = 0 : i64, scratch_operands = 0 : i64, tpu.core_type = #tpu.core_type<tc>, window_params = [{transform_indices = @transform_0, window_bounds = array<i64: 32, 128>}, {pipeline_mode = #tpu.pipeline_mode<synchronous>, transform_indices = @transform_1, window_bounds = array<i64: 256, 128>}, {pipeline_mode = #tpu.pipeline_mode<synchronous>, transform_indices = @transform_2, window_bounds = array<i64: 256, 1>}, {pipeline_mode = #tpu.pipeline_mode<synchronous>, transform_indices = @transform_3, window_bounds = array<i64: 256, 1>}, {transform_indices = @transform_4, window_bounds = array<i64: 1, 1>}, {transform_indices = @transform_5, window_bounds = array<i64: 1, 32>}]} {
    %c0 = arith.constant 0 : index
    %c0_0 = arith.constant 0 : index
    %0 = vector.load %arg1[%c0, %c0_0] : memref<32x128xf32, #tpu.memory_space<vmem>>, vector<32x128xf32>
    %1 = arith.truncf %0 : vector<32x128xf32> to vector<32x128xbf16>
    %c0_1 = arith.constant 0 : index
    %c0_2 = arith.constant 0 : index
    %2 = vector.load %arg2[%c0_1, %c0_2] : memref<256x128xbf16, #tpu.memory_space<vmem>>, vector<256x128xbf16>
    %cst = arith.constant dense<0.000000e+00> : vector<256x32xf32>
    %3 = tpu.matmul %2, %1, %cst {dimension_numbers = #tpu.dot_dimension_numbers<[1], [1], [0], [0], [0, 0, 1, 0], [], []>} : vector<256x128xbf16>, vector<32x128xbf16>, vector<256x32xf32> -> vector<256x32xf32>
    %c0_3 = arith.constant 0 : index
    %c0_4 = arith.constant 0 : index
    %4 = vector.load %arg3[%c0_3, %c0_4] : memref<256x1xf32, #tpu.memory_space<vmem>>, vector<256x1xf32>
    %5 = vector.broadcast %4 : vector<256x1xf32> to vector<256x32xf32>
    %6 = arith.addf %3, %5 : vector<256x32xf32>
    %cst_5 = arith.constant 0.000000e+00 : f32
    %7 = vector.broadcast %cst_5 : f32 to vector<256x32xf32>
    %8 = arith.maximumf %6, %7 : vector<256x32xf32>
    %c0_6 = arith.constant 0 : index
    %c0_7 = arith.constant 0 : index
    %9 = vector.load %arg4[%c0_6, %c0_7] : memref<256x1xf32, #tpu.memory_space<vmem>>, vector<256x1xf32>
    %10 = vector.broadcast %9 : vector<256x1xf32> to vector<256x32xf32>
    %11 = arith.mulf %8, %10 : vector<256x32xf32>
    %cst_8 = arith.constant dense<0.000000e+00> : vector<32xf32>
    %12 = vector.multi_reduction <add>, %11, %cst_8 [0] : vector<256x32xf32> to vector<32xf32>
    %13 = vector.shape_cast %12 : vector<32xf32> to vector<1x32xf32>
    %c0_9 = arith.constant 0 : index
    %c0_10 = arith.constant 0 : index
    %14 = memref.load %arg5[%c0_9, %c0_10] : memref<1x1xf32, #tpu.memory_space<smem>>
    %15 = vector.broadcast %14 : f32 to vector<1x32xf32>
    %16 = arith.addf %13, %15 : vector<1x32xf32>
    %c0_11 = arith.constant 0 : index
    %c0_12 = arith.constant 0 : index
    %17 = vector.load %arg6[%c0_11, %c0_12] : memref<1x32xf32, #tpu.memory_space<vmem>>, vector<1x32xf32>
    tpu.vector_store %arg6[%c0_11, %c0_12], %16 {strides = array<i32>} : memref<1x32xf32, #tpu.memory_space<vmem>>, vector<1x32xf32>,
    return
  }
  func.func @transform_0(%arg0: i32) -> (i32, i32) {
    %c0_i32 = arith.constant 0 : i32
    %c0_i32_0 = arith.constant 0 : i32
    return %arg0, %c0_i32 : i32, i32
  }
  func.func @transform_1(%arg0: i32) -> (i32, i32) {
    %c0_i32 = arith.constant 0 : i32
    %c0_i32_0 = arith.constant 0 : i32
    %c0_i32_1 = arith.constant 0 : i32
    return %c0_i32, %c0_i32_0 : i32, i32
  }
  func.func @transform_2(%arg0: i32) -> (i32, i32) {
    %c0_i32 = arith.constant 0 : i32
    %c0_i32_0 = arith.constant 0 : i32
    %c0_i32_1 = arith.constant 0 : i32
    return %c0_i32, %c0_i32_0 : i32, i32
  }
  func.func @transform_3(%arg0: i32) -> (i32, i32) {
    %c0_i32 = arith.constant 0 : i32
    %c0_i32_0 = arith.constant 0 : i32
    %c0_i32_1 = arith.constant 0 : i32
    return %c0_i32, %c0_i32_0 : i32, i32
  }
  func.func @transform_4(%arg0: i32) -> (i32, i32) {
    %c0_i32 = arith.constant 0 : i32
    %c0_i32_0 = arith.constant 0 : i32
    %c0_i32_1 = arith.constant 0 : i32
    return %c0_i32, %c0_i32_0 : i32, i32
  }
  func.func @transform_5(%arg0: i32) -> (i32, i32) {
    %c0_i32 = arith.constant 0 : i32
    %c0_i32_0 = arith.constant 0 : i32
    return %c0_i32, %arg0 : i32, i32
  }
}

</mosaic_0001>

<llo_original>
// kernel: tpu_custom_call.1
$region0: #{tpu_custom_call.1}
  #allocation0 [shape = 'u32[]', space=smem, size = 0x4, offset = 0x4, fixed_abs, tag = 'smem constant byte address 0x4 - core index']
  #allocation1 [shape = 'u32[144,128]{1,0:T(1,128)}', space=vmem, size = 0x12000, scoped, tag = 'internal scratch']
  #allocation2 [shape = 'f32[1,1]{1,0:T(1,128)S(6)}', space=smem, size = 0x200, scoped, tag = 'scoped memory for tpu_custom_call.1']
  %s0 = inlined_call_operand.vmem [shape: f32[32,128], index: 0, kind: input, shape index: {}]
  %s1 = inlined_call_operand.vmem [shape: bf16[256,128], index: 1, kind: input, shape index: {}]
  %s2 = inlined_call_operand.vmem [shape: f32[256,1], index: 2, kind: input, shape index: {}]
  %s3 = inlined_call_operand.vmem [shape: f32[256,1], index: 3, kind: input, shape index: {}]
  %s4 = inlined_call_operand.<no memory space> [shape: f32[1,1], index: 4, kind: input, shape index: {}]
  %s5 = inlined_call_operand.hbm [shape: f32[1,32], index: 5, kind: output, shape index: {}]
  %s6 = sld [smem:[#allocation0]]
  $region30: #{tpu_custom_call.1} parent=0
    _
  %s8 = ssub.s32 1, %s6
  %s9 = scalar_select 0, %s8, %s6
  %10 = sst [smem:[#allocation2]] %s4
  $region1: #{tpu_custom_call.1} parent=0
    #allocation3 [shape = 'u8[512]{0}', space=vmem, size = 0x400, scoped, tag = 'output window, operand 0, single buffered']
    #allocation4 [shape = 's32[1]{0}', space=sflag, size = 0x4, scoped, tag = 'scoped memory for tpu_custom_call.1']
    %11 = vsyncpa [#allocation4], 0
    // Predicated region
    $region2: #{tpu_custom_call.1} parent=1 // pred_check
      _
    $region3: #{tpu_custom_call.1} parent=1 // pred_check_branch
      %13 = sbr.rel (0) target = $region5
    $region4: #{tpu_custom_call.1} parent=1 // pred_region
      _
    $region5: #{tpu_custom_call.1} parent=1 // pred_fallthru
      _
    // Predicated region
    $region6: #{tpu_custom_call.1} parent=1 // pred_check
      _
    $region7: #{tpu_custom_call.1} parent=1 // pred_check_branch
      %15 = sbr.rel (0) target = $region9
    $region8: #{tpu_custom_call.1} parent=1 // pred_region
      _
    $region9: #{tpu_custom_call.1} parent=1 // pred_fallthru
      _
    // Predicated region
    $region10: #{tpu_custom_call.1} parent=1 // pred_check
      _
    $region11: #{tpu_custom_call.1} parent=1 // pred_check_branch
      %17 = sbr.rel (0) target = $region13
    $region12: #{tpu_custom_call.1} parent=1 // pred_region
      _
    $region13: #{tpu_custom_call.1} parent=1 // pred_fallthru
      _
    // Predicated region
    $region14: #{tpu_custom_call.1} parent=1 // pred_check
      _
    $region15: #{tpu_custom_call.1} parent=1 // pred_check_branch
      %19 = sbr.rel (0) target = $region17
    $region16: #{tpu_custom_call.1} parent=1 // pred_region
      _
    $region17: #{tpu_custom_call.1} parent=1 // pred_fallthru
      _
    // Predicated region
    $region18: #{tpu_custom_call.1} parent=1 // pred_check
      _
    $region19: #{tpu_custom_call.1} parent=1 // pred_check_branch
      %21 = sbr.rel (0) target = $region21
    $region20: #{tpu_custom_call.1} parent=1 // pred_region
      _
    $region21: #{tpu_custom_call.1} parent=1 // pred_fallthru
      _
    %v23 = vld [vmem:[%s0] sm:$0xff]
    %v24 = vld [vmem:[%s0 + $0x8] sm:$0xff]
    %v25 = vld [vmem:[%s0 + $0x10] sm:$0xff]
    %v26 = vld [vmem:[%s0 + $0x18] sm:$0xff]
    %v27 = vpack.c.bf16 %v24, %v23
    %v28 = vpack.c.bf16 %v26, %v25
    %v29 = vld [vmem:[%s1] sm:$0xf]
    %v30 = vld [vmem:[%s1 + $0x4] sm:$0xf]
    %v31 = vld [vmem:[%s1 + $0x8] sm:$0xf]
    %v32 = vld [vmem:[%s1 + $0xc] sm:$0xf]
    %v33 = vld [vmem:[%s1 + $0x10] sm:$0xf]
    %v34 = vld [vmem:[%s1 + $0x14] sm:$0xf]
    %v35 = vld [vmem:[%s1 + $0x18] sm:$0xf]
    %v36 = vld [vmem:[%s1 + $0x1c] sm:$0xf]
    %v37 = vld [vmem:[%s1 + $0x20] sm:$0xf]
    %v38 = vld [vmem:[%s1 + $0x24] sm:$0xf]
    %v39 = vld [vmem:[%s1 + $0x28] sm:$0xf]
    %v40 = vld [vmem:[%s1 + $0x2c] sm:$0xf]
    %v41 = vld [vmem:[%s1 + $0x30] sm:$0xf]
    %v42 = vld [vmem:[%s1 + $0x34] sm:$0xf]
    %v43 = vld [vmem:[%s1 + $0x38] sm:$0xf]
    %v44 = vld [vmem:[%s1 + $0x3c] sm:$0xf]
    %v45 = vld [vmem:[%s1 + $0x40] sm:$0xf]
    %v46 = vld [vmem:[%s1 + $0x44] sm:$0xf]
    %v47 = vld [vmem:[%s1 + $0x48] sm:$0xf]
    %v48 = vld [vmem:[%s1 + $0x4c] sm:$0xf]
    %v49 = vld [vmem:[%s1 + $0x50] sm:$0xf]
    %v50 = vld [vmem:[%s1 + $0x54] sm:$0xf]
    %v51 = vld [vmem:[%s1 + $0x58] sm:$0xf]
    %v52 = vld [vmem:[%s1 + $0x5c] sm:$0xf]
    %v53 = vld [vmem:[%s1 + $0x60] sm:$0xf]
    %v54 = vld [vmem:[%s1 + $0x64] sm:$0xf]
    %v55 = vld [vmem:[%s1 + $0x68] sm:$0xf]
    %v56 = vld [vmem:[%s1 + $0x6c] sm:$0xf]
    %v57 = vld [vmem:[%s1 + $0x70] sm:$0xf]
    %v58 = vld [vmem:[%s1 + $0x74] sm:$0xf]
    %v59 = vld [vmem:[%s1 + $0x78] sm:$0xf]
    %v60 = vld [vmem:[%s1 + $0x7c] sm:$0xf]
    %v61 = vld [vmem:[%s2] sm:$0xff]
    %v62 = vld [vmem:[%s2 + $0x8] sm:$0xff]
    %v63 = vld [vmem:[%s2 + $0x10] sm:$0xff]
    %v64 = vld [vmem:[%s2 + $0x18] sm:$0xff]
    %v65 = vld [vmem:[%s2 + $0x20] sm:$0xff]
    %v66 = vld [vmem:[%s2 + $0x28] sm:$0xff]
    %v67 = vld [vmem:[%s2 + $0x30] sm:$0xff]
    %v68 = vld [vmem:[%s2 + $0x38] sm:$0xff]
    %v69 = vld [vmem:[%s2 + $0x40] sm:$0xff]
    %v70 = vld [vmem:[%s2 + $0x48] sm:$0xff]
    %v71 = vld [vmem:[%s2 + $0x50] sm:$0xff]
    %v72 = vld [vmem:[%s2 + $0x58] sm:$0xff]
    %v73 = vld [vmem:[%s2 + $0x60] sm:$0xff]
    %v74 = vld [vmem:[%s2 + $0x68] sm:$0xff]
    %v75 = vld [vmem:[%s2 + $0x70] sm:$0xff]
    %v76 = vld [vmem:[%s2 + $0x78] sm:$0xff]
    %v77 = vld [vmem:[%s2 + $0x80] sm:$0xff]
    %v78 = vld [vmem:[%s2 + $0x88] sm:$0xff]
    %v79 = vld [vmem:[%s2 + $0x90] sm:$0xff]
    %v80 = vld [vmem:[%s2 + $0x98] sm:$0xff]
    %v81 = vld [vmem:[%s2 + $0xa0] sm:$0xff]
    %v82 = vld [vmem:[%s2 + $0xa8] sm:$0xff]
    %v83 = vld [vmem:[%s2 + $0xb0] sm:$0xff]
    %v84 = vld [vmem:[%s2 + $0xb8] sm:$0xff]
    %v85 = vld [vmem:[%s2 + $0xc0] sm:$0xff]
    %v86 = vld [vmem:[%s2 + $0xc8] sm:$0xff]
    %v87 = vld [vmem:[%s2 + $0xd0] sm:$0xff]
    %v88 = vld [vmem:[%s2 + $0xd8] sm:$0xff]
    %v89 = vld [vmem:[%s2 + $0xe0] sm:$0xff]
    %v90 = vld [vmem:[%s2 + $0xe8] sm:$0xff]
    %v91 = vld [vmem:[%s2 + $0xf0] sm:$0xff]
    %v92 = vld [vmem:[%s2 + $0xf8] sm:$0xff]
    %94 = vset.pattern.permute.xlu0 0
    %95 = vperm.xlu0 %94, %v61
    %v96 = vpop.permute.xlu0 %95
    %99 = vset.pattern.permute.xlu0 0
    %100 = vperm.xlu0 %99, %v62
    %v101 = vpop.permute.xlu0 %100
    %104 = vset.pattern.permute.xlu0 0
    %105 = vperm.xlu0 %104, %v63
    %v106 = vpop.permute.xlu0 %105
    %109 = vset.pattern.permute.xlu0 0
    %110 = vperm.xlu0 %109, %v64
    %v111 = vpop.permute.xlu0 %110
    %114 = vset.pattern.permute.xlu0 0
    %115 = vperm.xlu0 %114, %v65
    %v116 = vpop.permute.xlu0 %115
    %119 = vset.pattern.permute.xlu0 0
    %120 = vperm.xlu0 %119, %v66
    %v121 = vpop.permute.xlu0 %120
    %124 = vset.pattern.permute.xlu0 0
    %125 = vperm.xlu0 %124, %v67
    %v126 = vpop.permute.xlu0 %125
    %129 = vset.pattern.permute.xlu0 0
    %130 = vperm.xlu0 %129, %v68
    %v131 = vpop.permute.xlu0 %130
    %134 = vset.pattern.permute.xlu0 0
    %135 = vperm.xlu0 %134, %v69
    %v136 = vpop.permute.xlu0 %135
    %139 = vset.pattern.permute.xlu0 0
    %140 = vperm.xlu0 %139, %v70
    %v141 = vpop.permute.xlu0 %140
    %144 = vset.pattern.permute.xlu0 0
    %145 = vperm.xlu0 %144, %v71
    %v146 = vpop.permute.xlu0 %145
    %149 = vset.pattern.permute.xlu0 0
    %150 = vperm.xlu0 %149, %v72
    %v151 = vpop.permute.xlu0 %150
    %154 = vset.pattern.permute.xlu0 0
    %155 = vperm.xlu0 %154, %v73
    %v156 = vpop.permute.xlu0 %155
    %159 = vset.pattern.permute.xlu0 0
    %160 = vperm.xlu0 %159, %v74
    %v161 = vpop.permute.xlu0 %160
    %164 = vset.pattern.permute.xlu0 0
    %165 = vperm.xlu0 %164, %v75
    %v166 = vpop.permute.xlu0 %165
    %169 = vset.pattern.permute.xlu0 0
    %170 = vperm.xlu0 %169, %v76
    %v171 = vpop.permute.xlu0 %170
    %174 = vset.pattern.permute.xlu0 0
    %175 = vperm.xlu0 %174, %v77
    %v176 = vpop.permute.xlu0 %175
    %179 = vset.pattern.permute.xlu0 0
    %180 = vperm.xlu0 %179, %v78
    %v181 = vpop.permute.xlu0 %180
    %184 = vset.pattern.permute.xlu0 0
    %185 = vperm.xlu0 %184, %v79
    %v186 = vpop.permute.xlu0 %185
    %189 = vset.pattern.permute.xlu0 0
    %190 = vperm.xlu0 %189, %v80
    %v191 = vpop.permute.xlu0 %190
    %194 = vset.pattern.permute.xlu0 0
    %195 = vperm.xlu0 %194, %v81
    %v196 = vpop.permute.xlu0 %195
    %199 = vset.pattern.permute.xlu0 0
    %200 = vperm.xlu0 %199, %v82
    %v201 = vpop.permute.xlu0 %200
    %204 = vset.pattern.permute.xlu0 0
    %205 = vperm.xlu0 %204, %v83
    %v206 = vpop.permute.xlu0 %205
    %209 = vset.pattern.permute.xlu0 0
    %210 = vperm.xlu0 %209, %v84
    %v211 = vpop.permute.xlu0 %210
    %214 = vset.pattern.permute.xlu0 0
    %215 = vperm.xlu0 %214, %v85
    %v216 = vpop.permute.xlu0 %215
    %219 = vset.pattern.permute.xlu0 0
    %220 = vperm.xlu0 %219, %v86
    %v221 = vpop.permute.xlu0 %220
    %224 = vset.pattern.permute.xlu0 0
    %225 = vperm.xlu0 %224, %v87
    %v226 = vpop.permute.xlu0 %225
    %229 = vset.pattern.permute.xlu0 0
    %230 = vperm.xlu0 %229, %v88
    %v231 = vpop.permute.xlu0 %230
    %234 = vset.pattern.permute.xlu0 0
    %235 = vperm.xlu0 %234, %v89
    %v236 = vpop.permute.xlu0 %235
    %239 = vset.pattern.permute.xlu0 0
    %240 = vperm.xlu0 %239, %v90
    %v241 = vpop.permute.xlu0 %240
    %244 = vset.pattern.permute.xlu0 0
    %245 = vperm.xlu0 %244, %v91
    %v246 = vpop.permute.xlu0 %245
    %249 = vset.pattern.permute.xlu0 0
    %250 = vperm.xlu0 %249, %v92
    %v251 = vpop.permute.xlu0 %250
    %v285 = vunpack.c.l.b16 %v29
    %v286 = vunpack.c.l.b16 %v30
    %v287 = vunpack.c.l.b16 %v31
    %v288 = vunpack.c.l.b16 %v32
    %v289 = vunpack.c.l.b16 %v33
    %v290 = vunpack.c.l.b16 %v34
    %v291 = vunpack.c.l.b16 %v35
    %v292 = vunpack.c.l.b16 %v36
    %v293 = vunpack.c.l.b16 %v37
    %v294 = vunpack.c.l.b16 %v38
    %v295 = vunpack.c.l.b16 %v39
    %v296 = vunpack.c.l.b16 %v40
    %v297 = vunpack.c.l.b16 %v41
    %v298 = vunpack.c.l.b16 %v42
    %v299 = vunpack.c.l.b16 %v43
    %v300 = vunpack.c.l.b16 %v44
    %v301 = vunpack.c.l.b16 %v45
    %v302 = vunpack.c.l.b16 %v46
    %v303 = vunpack.c.l.b16 %v47
    %v304 = vunpack.c.l.b16 %v48
    %v305 = vunpack.c.l.b16 %v49
    %v306 = vunpack.c.l.b16 %v50
    %v307 = vunpack.c.l.b16 %v51
    %v308 = vunpack.c.l.b16 %v52
    %v309 = vunpack.c.l.b16 %v53
    %v310 = vunpack.c.l.b16 %v54
    %v311 = vunpack.c.l.b16 %v55
    %v312 = vunpack.c.l.b16 %v56
    %v313 = vunpack.c.l.b16 %v57
    %v314 = vunpack.c.l.b16 %v58
    %v315 = vunpack.c.l.b16 %v59
    %v316 = vunpack.c.l.b16 %v60
    %v317 = vpack.c.b16 %v286, %v285
    %v318 = vpack.c.b16 %v288, %v287
    %v319 = vpack.c.b16 %v290, %v289
    %v320 = vpack.c.b16 %v292, %v291
    %v321 = vpack.c.b16 %v294, %v293
    %v322 = vpack.c.b16 %v296, %v295
    %v323 = vpack.c.b16 %v298, %v297
    %v324 = vpack.c.b16 %v300, %v299
    %v325 = vpack.c.b16 %v302, %v301
    %v326 = vpack.c.b16 %v304, %v303
    %v327 = vpack.c.b16 %v306, %v305
    %v328 = vpack.c.b16 %v308, %v307
    %v329 = vpack.c.b16 %v310, %v309
    %v330 = vpack.c.b16 %v312, %v311
    %v331 = vpack.c.b16 %v314, %v313
    %v332 = vpack.c.b16 %v316, %v315
    %349 = vmatprep.subr.bf16.mxu0 0
    %350 = vmatpush1.bf16.xpose.msra.mxu0 %v27
    %351 = vmatprep.subr.bf16.mxu0 0
    %352 = vmatpush1.bf16.xpose.msra.mxu0 %v28
    %353 = vmatprep.subr.bf16.mxu0 0
    %354 = vmatpush1.bf16.xpose.msra.mxu0 0
    %355 = vmatprep.subr.bf16.mxu0 0
    %356 = vmatpush1.bf16.xpose.msra.mxu0 0
    %357 = vmatprep.subr.bf16.mxu0 0
    %358 = vmatpush1.bf16.xpose.msra.mxu0 0
    %359 = vmatprep.subr.bf16.mxu0 0
    %360 = vmatpush1.bf16.xpose.msra.mxu0 0
    %361 = vmatprep.subr.bf16.mxu0 0
    %362 = vmatpush1.bf16.xpose.msra.mxu0 0
    %363 = vmatprep.subr.bf16.mxu0 0
    %364 = vmatpush1.bf16.xpose.msra.mxu0 0
    %365 = vmatprep.subr.bf16.mxu0 0
    %366 = vmatpush1.bf16.xpose.msra.mxu0 0
    %367 = vmatprep.subr.bf16.mxu0 0
    %368 = vmatpush1.bf16.xpose.msra.mxu0 0
    %369 = vmatprep.subr.bf16.mxu0 0
    %370 = vmatpush1.bf16.xpose.msra.mxu0 0
    %371 = vmatprep.subr.bf16.mxu0 0
    %372 = vmatpush1.bf16.xpose.msra.mxu0 0
    %373 = vmatprep.subr.bf16.mxu0 0
    %374 = vmatpush1.bf16.xpose.msra.mxu0 0
    %375 = vmatprep.subr.bf16.mxu0 0
    %376 = vmatpush1.bf16.xpose.msra.mxu0 0
    %377 = vmatprep.subr.bf16.mxu0 0
    %378 = vmatpush1.bf16.xpose.msra.mxu0 0
    %379 = vmatprep.subr.bf16.mxu0 0
    %380 = vmatpush1.bf16.xpose.msra.mxu0 0
    %381 = vmatprep.mubr.bf16.mxu0 0
    %382 = vmatmul.mubr.bf16.gmra.mrb[0].mxu0 %v317
    %v383 = vpop.f32.mrb[0].mxu0
    %v384 = vadd.f32 %v96, %v383
    %v385 = vpop.f32.mrb[0].mxu0
    %v386 = vpop.f32.mrb[0].mxu0
    %v387 = vadd.f32 %v101, %v386
    %v388 = vpop.f32.mrb[0].mxu0
    %389 = vmatprep.mubr.bf16.mxu0 0
    %390 = vmatmul.mubr.bf16.gmra.mrb[0].mxu0 %v318
    %v391 = vpop.f32.mrb[0].mxu0
    %v392 = vadd.f32 %v106, %v391
    %v393 = vpop.f32.mrb[0].mxu0
    %v394 = vpop.f32.mrb[0].mxu0
    %v395 = vadd.f32 %v111, %v394
    %v396 = vpop.f32.mrb[0].mxu0
    %397 = vmatprep.mubr.bf16.mxu0 0
    %398 = vmatmul.mubr.bf16.gmra.mrb[0].mxu0 %v319
    %v399 = vpop.f32.mrb[0].mxu0
    %v400 = vadd.f32 %v116, %v399
    %v401 = vpop.f32.mrb[0].mxu0
    %v402 = vpop.f32.mrb[0].mxu0
    %v403 = vadd.f32 %v121, %v402
    %v404 = vpop.f32.mrb[0].mxu0
    %405 = vmatprep.mubr.bf16.mxu0 0
    %406 = vmatmul.mubr.bf16.gmra.mrb[0].mxu0 %v320
    %v407 = vpop.f32.mrb[0].mxu0
    %v408 = vadd.f32 %v126, %v407
    %v409 = vpop.f32.mrb[0].mxu0
    %v410 = vpop.f32.mrb[0].mxu0
    %v411 = vadd.f32 %v131, %v410
    %v412 = vpop.f32.mrb[0].mxu0
    %413 = vmatprep.mubr.bf16.mxu0 0
    %414 = vmatmul.mubr.bf16.gmra.mrb[0].mxu0 %v321
    %v415 = vpop.f32.mrb[0].mxu0
    %v416 = vadd.f32 %v136, %v415
    %v417 = vpop.f32.mrb[0].mxu0
    %v418 = vpop.f32.mrb[0].mxu0
    %v419 = vadd.f32 %v141, %v418
    %v420 = vpop.f32.mrb[0].mxu0
    %421 = vmatprep.mubr.bf16.mxu0 0
    %422 = vmatmul.mubr.bf16.gmra.mrb[0].mxu0 %v322
    %v423 = vpop.f32.mrb[0].mxu0
    %v424 = vadd.f32 %v146, %v423
    %v425 = vpop.f32.mrb[0].mxu0
    %v426 = vpop.f32.mrb[0].mxu0
    %v427 = vadd.f32 %v151, %v426
    %v428 = vpop.f32.mrb[0].mxu0
    %429 = vmatprep.mubr.bf16.mxu0 0
    %430 = vmatmul.mubr.bf16.gmra.mrb[0].mxu0 %v323
    %v431 = vpop.f32.mrb[0].mxu0
    %v432 = vadd.f32 %v156, %v431
    %v433 = vpop.f32.mrb[0].mxu0
    %v434 = vpop.f32.mrb[0].mxu0
    %v435 = vadd.f32 %v161, %v434
    %v436 = vpop.f32.mrb[0].mxu0
    %437 = vmatprep.mubr.bf16.mxu0 0
    %438 = vmatmul.mubr.bf16.gmra.mrb[0].mxu0 %v324
    %v439 = vpop.f32.mrb[0].mxu0
    %v440 = vadd.f32 %v166, %v439
    %v441 = vpop.f32.mrb[0].mxu0
    %v442 = vpop.f32.mrb[0].mxu0
    %v443 = vadd.f32 %v171, %v442
    %v444 = vpop.f32.mrb[0].mxu0
    %445 = vmatprep.mubr.bf16.mxu0 0
    %446 = vmatmul.mubr.bf16.gmra.mrb[0].mxu0 %v325
    %v447 = vpop.f32.mrb[0].mxu0
    %v448 = vadd.f32 %v176, %v447
    %v449 = vpop.f32.mrb[0].mxu0
    %v450 = vpop.f32.mrb[0].mxu0
    %v451 = vadd.f32 %v181, %v450
    %v452 = vpop.f32.mrb[0].mxu0
    %453 = vmatprep.mubr.bf16.mxu0 0
    %454 = vmatmul.mubr.bf16.gmra.mrb[0].mxu0 %v326
    %v455 = vpop.f32.mrb[0].mxu0
    %v456 = vadd.f32 %v186, %v455
    %v457 = vpop.f32.mrb[0].mxu0
    %v458 = vpop.f32.mrb[0].mxu0
    %v459 = vadd.f32 %v191, %v458
    %v460 = vpop.f32.mrb[0].mxu0
    %461 = vmatprep.mubr.bf16.mxu0 0
    %462 = vmatmul.mubr.bf16.gmra.mrb[0].mxu0 %v327
    %v463 = vpop.f32.mrb[0].mxu0
    %v464 = vadd.f32 %v196, %v463
    %v465 = vpop.f32.mrb[0].mxu0
    %v466 = vpop.f32.mrb[0].mxu0
    %v467 = vadd.f32 %v201, %v466
    %v468 = vpop.f32.mrb[0].mxu0
    %469 = vmatprep.mubr.bf16.mxu0 0
    %470 = vmatmul.mubr.bf16.gmra.mrb[0].mxu0 %v328
    %v471 = vpop.f32.mrb[0].mxu0
    %v472 = vadd.f32 %v206, %v471
    %v473 = vpop.f32.mrb[0].mxu0
    %v474 = vpop.f32.mrb[0].mxu0
    %v475 = vadd.f32 %v211, %v474
    %v476 = vpop.f32.mrb[0].mxu0
    %477 = vmatprep.mubr.bf16.mxu0 0
    %478 = vmatmul.mubr.bf16.gmra.mrb[0].mxu0 %v329
    %v479 = vpop.f32.mrb[0].mxu0
    %v480 = vadd.f32 %v216, %v479
    %v481 = vpop.f32.mrb[0].mxu0
    %v482 = vpop.f32.mrb[0].mxu0
    %v483 = vadd.f32 %v221, %v482
    %v484 = vpop.f32.mrb[0].mxu0
    %485 = vmatprep.mubr.bf16.mxu0 0
    %486 = vmatmul.mubr.bf16.gmra.mrb[0].mxu0 %v330
    %v487 = vpop.f32.mrb[0].mxu0
    %v488 = vadd.f32 %v226, %v487
    %v489 = vpop.f32.mrb[0].mxu0
    %v490 = vpop.f32.mrb[0].mxu0
    %v491 = vadd.f32 %v231, %v490
    %v492 = vpop.f32.mrb[0].mxu0
    %493 = vmatprep.mubr.bf16.mxu0 0
    %494 = vmatmul.mubr.bf16.gmra.mrb[0].mxu0 %v331
    %v495 = vpop.f32.mrb[0].mxu0
    %v496 = vadd.f32 %v236, %v495
    %v497 = vpop.f32.mrb[0].mxu0
    %v498 = vpop.f32.mrb[0].mxu0
    %v499 = vadd.f32 %v241, %v498
    %v500 = vpop.f32.mrb[0].mxu0
    %501 = vmatprep.mubr.bf16.mxu0 0
    %502 = vmatmul.mubr.bf16.gmra.mrb[0].mxu0 %v332
    %v503 = vpop.f32.mrb[0].mxu0
    %v504 = vadd.f32 %v246, %v503
    %v505 = vpop.f32.mrb[0].mxu0
    %v506 = vpop.f32.mrb[0].mxu0
    %v507 = vadd.f32 %v251, %v506
    %v508 = vpop.f32.mrb[0].mxu0
    %509 = vdwg.mxu0
    %v510 = vmax.f32 %v384, 0.0
    %v511 = vmax.f32 %v387, 0.0
    %v512 = vmax.f32 %v392, 0.0
    %v513 = vmax.f32 %v395, 0.0
    %v514 = vmax.f32 %v400, 0.0
    %v515 = vmax.f32 %v403, 0.0
    %v516 = vmax.f32 %v408, 0.0
    %v517 = vmax.f32 %v411, 0.0
    %v518 = vmax.f32 %v416, 0.0
    %v519 = vmax.f32 %v419, 0.0
    %v520 = vmax.f32 %v424, 0.0
    %v521 = vmax.f32 %v427, 0.0
    %v522 = vmax.f32 %v432, 0.0
    %v523 = vmax.f32 %v435, 0.0
    %v524 = vmax.f32 %v440, 0.0
    %v525 = vmax.f32 %v443, 0.0
    %v526 = vmax.f32 %v448, 0.0
    %v527 = vmax.f32 %v451, 0.0
    %v528 = vmax.f32 %v456, 0.0
    %v529 = vmax.f32 %v459, 0.0
    %v530 = vmax.f32 %v464, 0.0
    %v531 = vmax.f32 %v467, 0.0
    %v532 = vmax.f32 %v472, 0.0
    %v533 = vmax.f32 %v475, 0.0
    %v534 = vmax.f32 %v480, 0.0
    %v535 = vmax.f32 %v483, 0.0
    %v536 = vmax.f32 %v488, 0.0
    %v537 = vmax.f32 %v491, 0.0
    %v538 = vmax.f32 %v496, 0.0
    %v539 = vmax.f32 %v499, 0.0
    %v540 = vmax.f32 %v504, 0.0
    %v541 = vmax.f32 %v507, 0.0
    %v542 = vld [vmem:[%s3] sm:$0xff]
    %v543 = vld [vmem:[%s3 + $0x8] sm:$0xff]
    %v544 = vld [vmem:[%s3 + $0x10] sm:$0xff]
    %v545 = vld [vmem:[%s3 + $0x18] sm:$0xff]
    %v546 = vld [vmem:[%s3 + $0x20] sm:$0xff]
    %v547 = vld [vmem:[%s3 + $0x28] sm:$0xff]
    %v548 = vld [vmem:[%s3 + $0x30] sm:$0xff]
    %v549 = vld [vmem:[%s3 + $0x38] sm:$0xff]
    %v550 = vld [vmem:[%s3 + $0x40] sm:$0xff]
    %v551 = vld [vmem:[%s3 + $0x48] sm:$0xff]
    %v552 = vld [vmem:[%s3 + $0x50] sm:$0xff]
    %v553 = vld [vmem:[%s3 + $0x58] sm:$0xff]
    %v554 = vld [vmem:[%s3 + $0x60] sm:$0xff]
    %v555 = vld [vmem:[%s3 + $0x68] sm:$0xff]
    %v556 = vld [vmem:[%s3 + $0x70] sm:$0xff]
    %v557 = vld [vmem:[%s3 + $0x78] sm:$0xff]
    %v558 = vld [vmem:[%s3 + $0x80] sm:$0xff]
    %v559 = vld [vmem:[%s3 + $0x88] sm:$0xff]
    %v560 = vld [vmem:[%s3 + $0x90] sm:$0xff]
    %v561 = vld [vmem:[%s3 + $0x98] sm:$0xff]
    %v562 = vld [vmem:[%s3 + $0xa0] sm:$0xff]
    %v563 = vld [vmem:[%s3 + $0xa8] sm:$0xff]
    %v564 = vld [vmem:[%s3 + $0xb0] sm:$0xff]
    %v565 = vld [vmem:[%s3 + $0xb8] sm:$0xff]
    %v566 = vld [vmem:[%s3 + $0xc0] sm:$0xff]
    %v567 = vld [vmem:[%s3 + $0xc8] sm:$0xff]
    %v568 = vld [vmem:[%s3 + $0xd0] sm:$0xff]
    %v569 = vld [vmem:[%s3 + $0xd8] sm:$0xff]
    %v570 = vld [vmem:[%s3 + $0xe0] sm:$0xff]
    %v571 = vld [vmem:[%s3 + $0xe8] sm:$0xff]
    %v572 = vld [vmem:[%s3 + $0xf0] sm:$0xff]
    %v573 = vld [vmem:[%s3 + $0xf8] sm:$0xff]
    %575 = vset.pattern.permute.xlu0 0
    %576 = vperm.xlu0 %575, %v542
    %v577 = vpop.permute.xlu0 %576
    %580 = vset.pattern.permute.xlu0 0
    %581 = vperm.xlu0 %580, %v543
    %v582 = vpop.permute.xlu0 %581
    %585 = vset.pattern.permute.xlu0 0
    %586 = vperm.xlu0 %585, %v544
    %v587 = vpop.permute.xlu0 %586
    %590 = vset.pattern.permute.xlu0 0
    %591 = vperm.xlu0 %590, %v545
    %v592 = vpop.permute.xlu0 %591
    %595 = vset.pattern.permute.xlu0 0
    %596 = vperm.xlu0 %595, %v546
    %v597 = vpop.permute.xlu0 %596
    %600 = vset.pattern.permute.xlu0 0
    %601 = vperm.xlu0 %600, %v547
    %v602 = vpop.permute.xlu0 %601
    %605 = vset.pattern.permute.xlu0 0
    %606 = vperm.xlu0 %605, %v548
    %v607 = vpop.permute.xlu0 %606
    %610 = vset.pattern.permute.xlu0 0
    %611 = vperm.xlu0 %610, %v549
    %v612 = vpop.permute.xlu0 %611
    %615 = vset.pattern.permute.xlu0 0
    %616 = vperm.xlu0 %615, %v550
    %v617 = vpop.permute.xlu0 %616
    %620 = vset.pattern.permute.xlu0 0
    %621 = vperm.xlu0 %620, %v551
    %v622 = vpop.permute.xlu0 %621
    %625 = vset.pattern.permute.xlu0 0
    %626 = vperm.xlu0 %625, %v552
    %v627 = vpop.permute.xlu0 %626
    %630 = vset.pattern.permute.xlu0 0
    %631 = vperm.xlu0 %630, %v553
    %v632 = vpop.permute.xlu0 %631
    %635 = vset.pattern.permute.xlu0 0
    %636 = vperm.xlu0 %635, %v554
    %v637 = vpop.permute.xlu0 %636
    %640 = vset.pattern.permute.xlu0 0
    %641 = vperm.xlu0 %640, %v555
    %v642 = vpop.permute.xlu0 %641
    %645 = vset.pattern.permute.xlu0 0
    %646 = vperm.xlu0 %645, %v556
    %v647 = vpop.permute.xlu0 %646
    %650 = vset.pattern.permute.xlu0 0
    %651 = vperm.xlu0 %650, %v557
    %v652 = vpop.permute.xlu0 %651
    %655 = vset.pattern.permute.xlu0 0
    %656 = vperm.xlu0 %655, %v558
    %v657 = vpop.permute.xlu0 %656
    %660 = vset.pattern.permute.xlu0 0
    %661 = vperm.xlu0 %660, %v559
    %v662 = vpop.permute.xlu0 %661
    %665 = vset.pattern.permute.xlu0 0
    %666 = vperm.xlu0 %665, %v560
    %v667 = vpop.permute.xlu0 %666
    %670 = vset.pattern.permute.xlu0 0
    %671 = vperm.xlu0 %670, %v561
    %v672 = vpop.permute.xlu0 %671
    %675 = vset.pattern.permute.xlu0 0
    %676 = vperm.xlu0 %675, %v562
    %v677 = vpop.permute.xlu0 %676
    %680 = vset.pattern.permute.xlu0 0
    %681 = vperm.xlu0 %680, %v563
    %v682 = vpop.permute.xlu0 %681
    %685 = vset.pattern.permute.xlu0 0
    %686 = vperm.xlu0 %685, %v564
    %v687 = vpop.permute.xlu0 %686
    %690 = vset.pattern.permute.xlu0 0
    %691 = vperm.xlu0 %690, %v565
    %v692 = vpop.permute.xlu0 %691
    %695 = vset.pattern.permute.xlu0 0
    %696 = vperm.xlu0 %695, %v566
    %v697 = vpop.permute.xlu0 %696
    %700 = vset.pattern.permute.xlu0 0
    %701 = vperm.xlu0 %700, %v567
    %v702 = vpop.permute.xlu0 %701
    %705 = vset.pattern.permute.xlu0 0
    %706 = vperm.xlu0 %705, %v568
    %v707 = vpop.permute.xlu0 %706
    %710 = vset.pattern.permute.xlu0 0
    %711 = vperm.xlu0 %710, %v569
    %v712 = vpop.permute.xlu0 %711
    %715 = vset.pattern.permute.xlu0 0
    %716 = vperm.xlu0 %715, %v570
    %v717 = vpop.permute.xlu0 %716
    %720 = vset.pattern.permute.xlu0 0
    %721 = vperm.xlu0 %720, %v571
    %v722 = vpop.permute.xlu0 %721
    %725 = vset.pattern.permute.xlu0 0
    %726 = vperm.xlu0 %725, %v572
    %v727 = vpop.permute.xlu0 %726
    %730 = vset.pattern.permute.xlu0 0
    %731 = vperm.xlu0 %730, %v573
    %v732 = vpop.permute.xlu0 %731
    %v734 = vmul.f32 %v510, %v577
    %v735 = vmul.f32 %v511, %v582
    %v736 = vmul.f32 %v512, %v587
    %v737 = vmul.f32 %v513, %v592
    %v738 = vmul.f32 %v514, %v597
    %v739 = vmul.f32 %v515, %v602
    %v740 = vmul.f32 %v516, %v607
    %v741 = vmul.f32 %v517, %v612
    %v742 = vmul.f32 %v518, %v617
    %v743 = vmul.f32 %v519, %v622
    %v744 = vmul.f32 %v520, %v627
    %v745 = vmul.f32 %v521, %v632
    %v746 = vmul.f32 %v522, %v637
    %v747 = vmul.f32 %v523, %v642
    %v748 = vmul.f32 %v524, %v647
    %v749 = vmul.f32 %v525, %v652
    %v750 = vmul.f32 %v526, %v657
    %v751 = vmul.f32 %v527, %v662
    %v752 = vmul.f32 %v528, %v667
    %v753 = vmul.f32 %v529, %v672
    %v754 = vmul.f32 %v530, %v677
    %v755 = vmul.f32 %v531, %v682
    %v756 = vmul.f32 %v532, %v687
    %v757 = vmul.f32 %v533, %v692
    %v758 = vmul.f32 %v534, %v697
    %v759 = vmul.f32 %v535, %v702
    %v760 = vmul.f32 %v536, %v707
    %v761 = vmul.f32 %v537, %v712
    %v762 = vmul.f32 %v538, %v717
    %v763 = vmul.f32 %v539, %v722
    %v764 = vmul.f32 %v540, %v727
    %v765 = vmul.f32 %v541, %v732
    %vm766 = vcmask 261120
    %v767 = vsel %vm766, %v734, 0.0
    %v768 = vsel %vm766, %v735, 0.0
    %v769 = vadd.f32 %v767, %v768
    %v770 = vsel %vm766, %v736, 0.0
    %v771 = vadd.f32 %v769, %v770
    %v772 = vsel %vm766, %v737, 0.0
    %v773 = vadd.f32 %v771, %v772
    %v774 = vsel %vm766, %v738, 0.0
    %v775 = vadd.f32 %v773, %v774
    %v776 = vsel %vm766, %v739, 0.0
    %v777 = vadd.f32 %v775, %v776
    %v778 = vsel %vm766, %v740, 0.0
    %v779 = vadd.f32 %v777, %v778
    %v780 = vsel %vm766, %v741, 0.0
    %v781 = vadd.f32 %v779, %v780
    %v782 = vsel %vm766, %v742, 0.0
    %v783 = vadd.f32 %v781, %v782
    %v784 = vsel %vm766, %v743, 0.0
    %v785 = vadd.f32 %v783, %v784
    %v786 = vsel %vm766, %v744, 0.0
    %v787 = vadd.f32 %v785, %v786
    %v788 = vsel %vm766, %v745, 0.0
    %v789 = vadd.f32 %v787, %v788
    %v790 = vsel %vm766, %v746, 0.0
    %v791 = vadd.f32 %v789, %v790
    %v792 = vsel %vm766, %v747, 0.0
    %v793 = vadd.f32 %v791, %v792
    %v794 = vsel %vm766, %v748, 0.0
    %v795 = vadd.f32 %v793, %v794
    %v796 = vsel %vm766, %v749, 0.0
    %v797 = vadd.f32 %v795, %v796
    %v798 = vsel %vm766, %v750, 0.0
    %v799 = vadd.f32 %v797, %v798
    %v800 = vsel %vm766, %v751, 0.0
    %v801 = vadd.f32 %v799, %v800
    %v802 = vsel %vm766, %v752, 0.0
    %v803 = vadd.f32 %v801, %v802
    %v804 = vsel %vm766, %v753, 0.0
    %v805 = vadd.f32 %v803, %v804
    %v806 = vsel %vm766, %v754, 0.0
    %v807 = vadd.f32 %v805, %v806
    %v808 = vsel %vm766, %v755, 0.0
    %v809 = vadd.f32 %v807, %v808
    %v810 = vsel %vm766, %v756, 0.0
    %v811 = vadd.f32 %v809, %v810
    %v812 = vsel %vm766, %v757, 0.0
    %v813 = vadd.f32 %v811, %v812
    %v814 = vsel %vm766, %v758, 0.0
    %v815 = vadd.f32 %v813, %v814
    %v816 = vsel %vm766, %v759, 0.0
    %v817 = vadd.f32 %v815, %v816
    %v818 = vsel %vm766, %v760, 0.0
    %v819 = vadd.f32 %v817, %v818
    %v820 = vsel %vm766, %v761, 0.0
    %v821 = vadd.f32 %v819, %v820
    %v822 = vsel %vm766, %v762, 0.0
    %v823 = vadd.f32 %v821, %v822
    %v824 = vsel %vm766, %v763, 0.0
    %v825 = vadd.f32 %v823, %v824
    %v826 = vsel %vm766, %v764, 0.0
    %v827 = vadd.f32 %v825, %v826
    %v828 = vsel %vm766, %v765, 0.0
    %v829 = vadd.f32 %v827, %v828
    %v830 = vrot.slane %v829, 4
    %v831 = vadd.f32 %v829, %v830
    %v832 = vrot.slane %v831, 2
    %v833 = vadd.f32 %v831, %v832
    %v834 = vrot.slane %v833, 1
    %v835 = vadd.f32 %v833, %v834
    %s836 = sld [smem:[#allocation2]]
    %v837 = vstv %s836
    %v838 = vadd.f32 %v835, %v837
    %vm839 = vcmask 253952
    %840 = vst.msk [vmem:[#allocation3] sm:$0x1] %vm839, %v838
    // Predicated region
    $region22: #{tpu_custom_call.1} parent=1 // pred_check
      _
    $region23: #{tpu_custom_call.1} parent=1 // pred_check_branch
      %842 = sbr.rel (0) target = $region25
    $region24: #{tpu_custom_call.1} parent=1 // pred_region
      %s844 = ssub.s32 16, 16
      %845 = vsyncadd [#allocation4], %s844
      %s847 = sshll.u32 [#allocation3], 4
      %s848 = int_to_ptr.vmem [resolvable:$true] %s847
      %850 = dma.vmem_to_hbm [thread:$0]  %s848, 16, %s5, [#allocation4]
    $region25: #{tpu_custom_call.1} parent=1 // pred_fallthru
      _
    // Predicated region
    $region26: #{tpu_custom_call.1} parent=1 // pred_check
      _
    $region27: #{tpu_custom_call.1} parent=1 // pred_check_branch
      %852 = sbr.rel (0) target = $region29
    $region28: #{tpu_custom_call.1} parent=1 // pred_region
      %853 = dma.done [#allocation4], 16
    $region29: #{tpu_custom_call.1} parent=1 // pred_fallthru
      _
    %854 = vsyncpa [#allocation4], 1

</llo_original>
